<compile_context>
chip_gen: v5e
topology: v5e:2x2
jax: 0.10.0
libtpu: 0.0.40
codegen_flags: <defaults>
</compile_context>

<pallas_src>
import functools

import jax
import jax.numpy as jnp
from jax.experimental import pallas as pl
from jax.experimental.pallas import tpu as pltpu


def _round_up(a: int, b: int) -> int:
    return (a + b - 1) // b * b


def mlp_kernel(x_ref, w1_ref, w2_ref, o_ref):
    # In-kernel bf16 cast of the activation tile (VPU work, hidden under DMA).
    x = x_ref[...].astype(jnp.bfloat16)
    # matmul -> ReLU -> matmul, fused; both dots accumulate in f32 on the MXU.
    h = jnp.dot(x, w1_ref[...], preferred_element_type=jnp.float32)
    h = jnp.maximum(h, 0.0)
    y = jnp.dot(h.astype(jnp.bfloat16), w2_ref[...],
                preferred_element_type=jnp.float32)
    o_ref[...] = y.astype(o_ref.dtype)


def prepare_mlp_params(w1, w2, *, compute_dtype=jnp.bfloat16):
    """One-time weight preparation (NOT per-forward glue).

    w1: (hid_dim, input_dim), w2: (out_dim, hid_dim)  -- PyTorch nn.Linear layout.
    Returns (w1_t, w2_t):
      w1_t : (input_dim, hid_dim) in compute_dtype
      w2_t : (hid_dim, out_dim)   in compute_dtype  (no lane padding)
    """
    w1_t = jnp.asarray(w1).T.astype(compute_dtype)   # (input_dim, hid_dim)
    w2_t = jnp.asarray(w2).T.astype(compute_dtype)   # (hid_dim, out_dim)
    return w1_t, w2_t


def _choose_batch_tile(B: int, block_batch: int) -> int:
    """Batch tile: multiple of 16 rows, capped by block_batch, and split so the
    'parallel' grid axis has >= 2 tiles (v7x megacore) when B is big enough."""
    tb = min(block_batch, _round_up(B, 16))
    if B > 16 and tb >= B:          # single tile would cover everything -> split
        tb = _round_up(pl.cdiv(B, 2), 16)
    return max(16, _round_up(tb, 16))


def mlp_forward(x, w1_t, w2_t, *, block_batch=2048):
    """x: (B, input_dim) f32; weights from prepare_mlp_params.
    Returns (B, out_dim) f32 (same dtype as x, like the PyTorch module)."""
    B, input_dim = x.shape
    in_dim_w, hid_dim = w1_t.shape
    hid_dim_w, out_dim = w2_t.shape
    assert in_dim_w == input_dim and hid_dim_w == hid_dim

    TB = _choose_batch_tile(B, block_batch)
    grid = (pl.cdiv(B, TB),)        # partial last block handled by Pallas

    w_itemsize = jnp.dtype(w1_t.dtype).itemsize
    x_itemsize = jnp.dtype(x.dtype).itemsize
    flops = 2 * B * (input_dim * hid_dim + hid_dim * out_dim)
    bytes_accessed = (B * input_dim * x_itemsize           # x (f32, read)
                      + input_dim * hid_dim * w_itemsize   # w1 (bf16)
                      + hid_dim * out_dim * w_itemsize     # w2 (bf16)
                      + B * out_dim * x_itemsize)          # out (f32, write)

    out = pl.pallas_call(
        mlp_kernel,
        out_shape=jax.ShapeDtypeStruct((B, out_dim), x.dtype),
        grid_spec=pltpu.PrefetchScalarGridSpec(
            num_scalar_prefetch=0,
            grid=grid,
            in_specs=[
                # x: one batch tile per grid step (double-buffered by Pallas).
                pl.BlockSpec((TB, input_dim), lambda i: (i, 0)),
                # Weights: same block every step -> stay resident in VMEM.
                pl.BlockSpec((input_dim, hid_dim), lambda i: (0, 0)),
                pl.BlockSpec((hid_dim, out_dim), lambda i: (0, 0)),
            ],
            # Last block dim == full array dim (out_dim) -> legal, unpadded.
            out_specs=pl.BlockSpec((TB, out_dim), lambda i: (i, 0)),
        ),
        compiler_params=pltpu.CompilerParams(
            # Batch tiles are independent -> shard across v7x's 2 TCs.
            dimension_semantics=("parallel",),
            # Explicit cap, valid on v5e/v6e/v7x; actual use is << this.
            vmem_limit_bytes=32 * 1024 * 1024,
        ),
        cost_estimate=pl.CostEstimate(
            flops=flops, transcendentals=0, bytes_accessed=bytes_accessed),
    )(x, w1_t, w2_t)

    # Output already has its final shape: no batch padding, no lane slice.
    return out


if __name__ == "__main__":
    # Module hyperparameters (RELATIONS is external in the original file; use 4).
    input_num = 4                                           # len(RELATIONS)
    hidden_dim = 32                                         # args.hidden_dim
    input_dim = input_num * hidden_dim                      # 128
    hid_num = input_num - 2 if input_num - 2 > 1 else input_num
    hid_dim = hid_num * hidden_dim                          # 64
    out_dim = hidden_dim                                    # 32

    batch = 32                                              # small demo batch

    key = jax.random.PRNGKey(0)
    kx, k1, k2 = jax.random.split(key, 3)

    x = jax.random.normal(kx, (batch, input_dim), dtype=jnp.float32)
    # Deterministic parameter init (Kaiming-uniform-like bounds, like nn.Linear).
    bound1 = 1.0 / (input_dim ** 0.5)
    bound2 = 1.0 / (hid_dim ** 0.5)
    w1 = jax.random.uniform(k1, (hid_dim, input_dim), jnp.float32,
                            minval=-bound1, maxval=bound1)
    w2 = jax.random.uniform(k2, (out_dim, hid_dim), jnp.float32,
                            minval=-bound2, maxval=bound2)

    # One-time weight prep (transpose + bf16 cast; no padding).
    w1_t, w2_t = prepare_mlp_params(w1, w2)

    # Small batch tile so the demo exercises a multi-step parallel grid.
    fwd = functools.partial(mlp_forward, block_batch=16)
    y = fwd(x, w1_t, w2_t)
    y = jax.block_until_ready(y)
    assert y.shape == (batch, out_dim)

    # Reference with the same bf16-input / f32-accumulation recipe (tight check).
    xb = x.astype(jnp.bfloat16)
    h_ref = jnp.maximum(
        jnp.dot(xb, w1.T.astype(jnp.bfloat16), preferred_element_type=jnp.float32),
        0.0)
    ref_bf16 = jnp.dot(h_ref.astype(jnp.bfloat16), w2.T.astype(jnp.bfloat16),
                       preferred_element_type=jnp.float32)
    assert jnp.allclose(y, ref_bf16, atol=1e-3, rtol=1e-3)

    # Full-f32 module reference (loose check: accepted bf16-compute precision loss).
    ref_f32 = jnp.maximum(x @ w1.T, 0.0) @ w2.T
    assert jnp.allclose(y, ref_f32, atol=5e-2, rtol=5e-2)

    print("KERNEL_OK")
</pallas_src>

<mosaic_0001>
module attributes {stable_mosaic.version = 11 : i64} {
  func.func @mlp_kernel(%arg0: i32, %arg1: memref<16x128xf32, #tpu.memory_space<vmem>>, %arg2: memref<128x64xbf16, #tpu.memory_space<vmem>>, %arg3: memref<64x32xbf16, #tpu.memory_space<vmem>>, %arg4: memref<16x32xf32, #tpu.memory_space<vmem>>) attributes {dimension_semantics = [#tpu.dimension_semantics<parallel>], iteration_bounds = array<i64: 2>, scalar_prefetch = 0 : i64, scratch_operands = 0 : i64, tpu.core_type = #tpu.core_type<tc>, window_params = [{transform_indices = @transform_0, window_bounds = array<i64: 16, 128>}, {pipeline_mode = #tpu.pipeline_mode<synchronous>, transform_indices = @transform_1, window_bounds = array<i64: 128, 64>}, {pipeline_mode = #tpu.pipeline_mode<synchronous>, transform_indices = @transform_2, window_bounds = array<i64: 64, 32>}, {transform_indices = @transform_3, window_bounds = array<i64: 16, 32>}]} {
    %c0 = arith.constant 0 : index
    %c0_0 = arith.constant 0 : index
    %0 = vector.load %arg1[%c0, %c0_0] : memref<16x128xf32, #tpu.memory_space<vmem>>, vector<16x128xf32>
    %1 = arith.truncf %0 : vector<16x128xf32> to vector<16x128xbf16>
    %c0_1 = arith.constant 0 : index
    %c0_2 = arith.constant 0 : index
    %2 = vector.load %arg2[%c0_1, %c0_2] : memref<128x64xbf16, #tpu.memory_space<vmem>>, vector<128x64xbf16>
    %cst = arith.constant dense<0.000000e+00> : vector<16x64xf32>
    %3 = tpu.matmul %1, %2, %cst {dimension_numbers = #tpu.dot_dimension_numbers<[1], [0], [0], [1], [0, 0, 1, 1], [], []>} : vector<16x128xbf16>, vector<128x64xbf16>, vector<16x64xf32> -> vector<16x64xf32>
    %cst_3 = arith.constant 0.000000e+00 : f32
    %4 = vector.broadcast %cst_3 : f32 to vector<16x64xf32>
    %5 = arith.maximumf %3, %4 : vector<16x64xf32>
    %6 = arith.truncf %5 : vector<16x64xf32> to vector<16x64xbf16>
    %c0_4 = arith.constant 0 : index
    %c0_5 = arith.constant 0 : index
    %7 = vector.load %arg3[%c0_4, %c0_5] : memref<64x32xbf16, #tpu.memory_space<vmem>>, vector<64x32xbf16>
    %cst_6 = arith.constant dense<0.000000e+00> : vector<16x32xf32>
    %8 = tpu.matmul %6, %7, %cst_6 {dimension_numbers = #tpu.dot_dimension_numbers<[1], [0], [0], [1], [0, 0, 1, 1], [], []>} : vector<16x64xbf16>, vector<64x32xbf16>, vector<16x32xf32> -> vector<16x32xf32>
    %c0_7 = arith.constant 0 : index
    %c0_8 = arith.constant 0 : index
    %9 = vector.load %arg4[%c0_7, %c0_8] : memref<16x32xf32, #tpu.memory_space<vmem>>, vector<16x32xf32>
    tpu.vector_store %arg4[%c0_7, %c0_8], %8 {strides = array<i32>} : memref<16x32xf32, #tpu.memory_space<vmem>>, vector<16x32xf32>,
    return
  }
  func.func @transform_0(%arg0: i32) -> (i32, i32) {
    %c0_i32 = arith.constant 0 : i32
    %c0_i32_0 = arith.constant 0 : i32
    return %arg0, %c0_i32 : i32, i32
  }
  func.func @transform_1(%arg0: i32) -> (i32, i32) {
    %c0_i32 = arith.constant 0 : i32
    %c0_i32_0 = arith.constant 0 : i32
    %c0_i32_1 = arith.constant 0 : i32
    return %c0_i32, %c0_i32_0 : i32, i32
  }
  func.func @transform_2(%arg0: i32) -> (i32, i32) {
    %c0_i32 = arith.constant 0 : i32
    %c0_i32_0 = arith.constant 0 : i32
    %c0_i32_1 = arith.constant 0 : i32
    return %c0_i32, %c0_i32_0 : i32, i32
  }
  func.func @transform_3(%arg0: i32) -> (i32, i32) {
    %c0_i32 = arith.constant 0 : i32
    %c0_i32_0 = arith.constant 0 : i32
    return %arg0, %c0_i32 : i32, i32
  }
}

</mosaic_0001>

<llo_original>
// kernel: tpu_custom_call.1
$region0: #{tpu_custom_call.1}
  #allocation0 [shape = 'u32[]', space=smem, size = 0x4, offset = 0x4, fixed_abs, tag = 'smem constant byte address 0x4 - core index']
  #allocation1 [shape = 'u32[72,128]{1,0:T(1,128)}', space=vmem, size = 0x9000, scoped, tag = 'internal scratch']
  %s0 = inlined_call_operand.vmem [shape: f32[32,128], index: 0, kind: input, shape index: {}]
  %s1 = inlined_call_operand.vmem [shape: bf16[128,64], index: 1, kind: input, shape index: {}]
  %s2 = inlined_call_operand.vmem [shape: bf16[64,32], index: 2, kind: input, shape index: {}]
  %s3 = inlined_call_operand.hbm [shape: f32[32,32], index: 3, kind: output, shape index: {}]
  %s4 = sld [smem:[#allocation0]]
  $region45: #{tpu_custom_call.1} parent=0
    _
  %s6 = ssub.s32 1, %s4
  %s7 = scalar_select 0, %s6, %s4
  $region1: #{tpu_custom_call.1} parent=0
    #allocation2 [shape = 'u8[16384]{0}', space=vmem, size = 0x4000, scoped, tag = 'output window, operand 0']
    #allocation3 [shape = 's32[2]{0}', space=sflag, size = 0x8, scoped, tag = 'scoped memory for tpu_custom_call.1']
    %8 = vsyncpa [#allocation3], 0
    %s9 = scalar_lea.sflag [#allocation3], 1
    %10 = vsyncpa %s9, 0
    loop: start=0, step=1, limit=4
    $region2: #{tpu_custom_call.1} parent=1 // loop_pre_header
      _
    $region3: #{tpu_custom_call.1} parent=1 // loop_header
      %s12 = sphi 0, %s16
      %p13 = scmp.ge.s32.totalorder %s12, 4
      %s22 = sphi 0, %s24
      %s25 = sphi 0, %s22
      %s26 = sphi 0, %s25
      %s42 = sphi 0, %s26
      %s46 = sphi 0, %s46
      %s48 = sphi 0, %s46
      %s49 = sphi 0, %s48
      %s63 = sphi 0, %s49
      %s67 = sphi 0, %s67
      %s69 = sphi 0, %s67
      %s70 = sphi 0, %s69
      %s84 = sphi 0, %s70
      %s90 = sphi 0, %s92
      %s93 = sphi 0, %s90
      %s94 = sphi 0, %s93
      %s110 = sphi 0, %s94
    $region4: #{tpu_custom_call.1} parent=1 // loop_header_branch
      %15 = sbr.rel (%p13) target = $region8
    $region5: #{tpu_custom_call.1} parent=1 // loop_body
      %s17 = ssub.s32 %s12, 1
      %s18 = ssub.s32 %s12, 2
      %s19 = sadd.s32 %s12, 1
      %s20 = ssub.s32 %s12, %s19
      %p21 = scmp.eq.s32.totalorder %s20, 0
      %s23 = sadd.s32 %s22, 1
      %s24 = scalar_select %p21, %s22, %s23
      %p27 = pneg %p21
      %p28 = scmp.eq.s32.totalorder %s12, 1
      %p29 = por %p27, %p28
      %p30 = scmp.ne.s32.totalorder %s22, %s25
      %p31 = scmp.eq.s32.totalorder %s12, 0
      %p32 = por %p30, %p31
      %p33 = scmp.ne.s32.totalorder %s22, %s25
      %p34 = scmp.eq.s32.totalorder %s17, 1
      %p35 = por %p33, %p34
      %p36 = scmp.ne.s32.totalorder %s25, %s26
      %p37 = scmp.eq.s32.totalorder %s17, 0
      %p38 = por %p36, %p37
      %p39 = scmp.ne.s32.totalorder %s25, %s26
      %p40 = scmp.eq.s32.totalorder %s18, 1
      %p41 = por %p39, %p40
      %p43 = scmp.ne.s32.totalorder %s26, %s42
      %p44 = scmp.eq.s32.totalorder %s18, 0
      %p45 = por %p43, %p44
      %s47 = sadd.s32 %s46, 1
      %p50 = scmp.eq.s32.totalorder %s12, 1
      %p51 = scmp.ne.s32.totalorder %s46, %s48
      %p52 = scmp.eq.s32.totalorder %s12, 0
      %p53 = por %p51, %p52
      %p54 = scmp.ne.s32.totalorder %s46, %s48
      %p55 = scmp.eq.s32.totalorder %s17, 1
      %p56 = por %p54, %p55
      %p57 = scmp.ne.s32.totalorder %s48, %s49
      %p58 = scmp.eq.s32.totalorder %s17, 0
      %p59 = por %p57, %p58
      %p60 = scmp.ne.s32.totalorder %s48, %s49
      %p61 = scmp.eq.s32.totalorder %s18, 1
      %p62 = por %p60, %p61
      %p64 = scmp.ne.s32.totalorder %s49, %s63
      %p65 = scmp.eq.s32.totalorder %s18, 0
      %p66 = por %p64, %p65
      %s68 = sadd.s32 %s67, 1
      %p71 = scmp.eq.s32.totalorder %s12, 1
      %p72 = scmp.ne.s32.totalorder %s67, %s69
      %p73 = scmp.eq.s32.totalorder %s12, 0
      %p74 = por %p72, %p73
      %p75 = scmp.ne.s32.totalorder %s67, %s69
      %p76 = scmp.eq.s32.totalorder %s17, 1
      %p77 = por %p75, %p76
      %p78 = scmp.ne.s32.totalorder %s69, %s70
      %p79 = scmp.eq.s32.totalorder %s17, 0
      %p80 = por %p78, %p79
      %p81 = scmp.ne.s32.totalorder %s69, %s70
      %p82 = scmp.eq.s32.totalorder %s18, 1
      %p83 = por %p81, %p82
      %p85 = scmp.ne.s32.totalorder %s70, %s84
      %p86 = scmp.eq.s32.totalorder %s18, 0
      %p87 = por %p85, %p86
      %s88 = ssub.s32 %s12, %s19
      %p89 = scmp.eq.s32.totalorder %s88, 0
      %s91 = sadd.s32 %s90, 1
      %s92 = scalar_select %p89, %s90, %s91
      %p95 = pneg %p89
      %p96 = scmp.eq.s32.totalorder %s12, 1
      %p97 = por %p95, %p96
      %p98 = scmp.ne.s32.totalorder %s90, %s93
      %p99 = scmp.eq.s32.totalorder %s12, 0
      %p100 = por %p98, %p99
      %p101 = scmp.ne.s32.totalorder %s90, %s93
      %p102 = scmp.eq.s32.totalorder %s17, 1
      %p103 = por %p101, %p102
      %p104 = scmp.ne.s32.totalorder %s93, %s94
      %p105 = scmp.eq.s32.totalorder %s17, 0
      %p106 = por %p104, %p105
      %p107 = scmp.ne.s32.totalorder %s93, %s94
      %p108 = scmp.eq.s32.totalorder %s18, 1
      %p109 = por %p107, %p108
      %p111 = scmp.ne.s32.totalorder %s94, %s110
      %p112 = scmp.eq.s32.totalorder %s18, 0
      %p113 = por %p111, %p112
      %p114 = scmp.le.s32.totalorder 1, %s12
      %p115 = scmp.lt.s32.totalorder %s12, 3
      %p116 = pnand %p114, %p115
      %p117 = pneg %p116
      // Predicated region
      $region9: #{tpu_custom_call.1} parent=5 // pred_check
        _
      $region10: #{tpu_custom_call.1} parent=5 // pred_check_branch
        %119 = sbr.rel (%p116) target = $region12
      $region11: #{tpu_custom_call.1} parent=5 // pred_region
        %s120 = ssub.s32 %s12, 1
        // Predicated region
        $region13: #{tpu_custom_call.1} parent=11 // pred_check
          %p121 = pneg %p59
        $region14: #{tpu_custom_call.1} parent=11 // pred_check_branch
          %123 = sbr.rel (%p121) target = $region16
        $region15: #{tpu_custom_call.1} parent=11 // pred_region
          _
        $region16: #{tpu_custom_call.1} parent=11 // pred_fallthru
          _
        // Predicated region
        $region17: #{tpu_custom_call.1} parent=11 // pred_check
          %p124 = pneg %p80
        $region18: #{tpu_custom_call.1} parent=11 // pred_check_branch
          %126 = sbr.rel (%p124) target = $region20
        $region19: #{tpu_custom_call.1} parent=11 // pred_region
          _
        $region20: #{tpu_custom_call.1} parent=11 // pred_fallthru
          _
      $region12: #{tpu_custom_call.1} parent=5 // pred_fallthru
        _
      %p127 = scmp.lt.s32.totalorder %s12, 2
      // Predicated region
      $region21: #{tpu_custom_call.1} parent=5 // pred_check
        %p128 = pneg %p127
      $region22: #{tpu_custom_call.1} parent=5 // pred_check_branch
        %130 = sbr.rel (%p128) target = $region24
      $region23: #{tpu_custom_call.1} parent=5 // pred_region
        // Predicated region
        $region25: #{tpu_custom_call.1} parent=23 // pred_check
          %p131 = pneg %p32
        $region26: #{tpu_custom_call.1} parent=23 // pred_check_branch
          %133 = sbr.rel (%p131) target = $region28
        $region27: #{tpu_custom_call.1} parent=23 // pred_region
          %s134 = smul.u32 2, %s12
          %p135 = scmp.lt.s32.totalorder %s134, 3
          %s136 = scalar_select %p135, %s134, 3
          %s137 = smul.addr %s136, 8
          %s138 = scalar_lea.vmem %s0, %s137
          %s139 = smul.u32 2, %s12
        $region28: #{tpu_custom_call.1} parent=23 // pred_fallthru
          _
      $region24: #{tpu_custom_call.1} parent=5 // pred_fallthru
        _
      %p140 = scmp.le.s32.totalorder 1, %s12
      %p141 = scmp.lt.s32.totalorder %s12, 3
      %p142 = pnand %p140, %p141
      %p143 = pneg %p142
      // Predicated region
      $region29: #{tpu_custom_call.1} parent=5 // pred_check
        _
      $region30: #{tpu_custom_call.1} parent=5 // pred_check_branch
        %145 = sbr.rel (%p142) target = $region32
      $region31: #{tpu_custom_call.1} parent=5 // pred_region
        %s146 = ssub.s32 %s12, 1
        %s147 = smul.u32 2, %s17
        %p148 = scmp.lt.s32.totalorder %s147, 3
        %s149 = scalar_select %p148, %s147, 3
        %s150 = smul.addr %s149, 8
        %s151 = scalar_lea.vmem %s0, %s150
        %p152 = pneg %p38
        %p153 = pneg %p35
        %p154 = pneg %p59
        %p155 = pneg %p56
        %p156 = pneg %p80
        %p157 = pneg %p77
        %p158 = pneg %p106
        %p159 = pneg %p103
        %s160 = sand.u32 %s93, 1
        %s161 = scalar_lea.sflag [#allocation3], %s160
        %s162 = sand.u32 %s93, 1
        %s163 = smul.addr %s162, 16
        %s164 = scalar_lea.vmem [#allocation2], %s163
        %s165 = smul.u32 2, %s17
        %p166 = scmp.lt.s32.totalorder %s165, 3
        %s167 = scalar_select %p166, %s165, 3
        %s168 = smul.addr %s167, 8
        %s169 = scalar_lea.vmem %s0, %s168
        %s170 = smul.u32 2, %s17
        %s171 = smul.u32 2, %s17
        %v173 = vld [vmem:[%s169] sm:$0xff]
        %v174 = vld [vmem:[%s169 + $0x8] sm:$0xff]
        %v175 = vpack.c.bf16 %v174, %v173
        %v176 = vld [vmem:[%s1] sm:$0xf]
        %v177 = vld [vmem:[%s1 + $0x4] sm:$0xf]
        %v178 = vld [vmem:[%s1 + $0x8] sm:$0xf]
        %v179 = vld [vmem:[%s1 + $0xc] sm:$0xf]
        %v180 = vld [vmem:[%s1 + $0x10] sm:$0xf]
        %v181 = vld [vmem:[%s1 + $0x14] sm:$0xf]
        %v182 = vld [vmem:[%s1 + $0x18] sm:$0xf]
        %v183 = vld [vmem:[%s1 + $0x1c] sm:$0xf]
        %v184 = vld [vmem:[%s1 + $0x20] sm:$0xf]
        %v185 = vld [vmem:[%s1 + $0x24] sm:$0xf]
        %v186 = vld [vmem:[%s1 + $0x28] sm:$0xf]
        %v187 = vld [vmem:[%s1 + $0x2c] sm:$0xf]
        %v188 = vld [vmem:[%s1 + $0x30] sm:$0xf]
        %v189 = vld [vmem:[%s1 + $0x34] sm:$0xf]
        %v190 = vld [vmem:[%s1 + $0x38] sm:$0xf]
        %v191 = vld [vmem:[%s1 + $0x3c] sm:$0xf]
        %v208 = vunpack.c.l.b16 %v176
        %v209 = vunpack.c.l.b16 %v177
        %v210 = vunpack.c.l.b16 %v178
        %v211 = vunpack.c.l.b16 %v179
        %v212 = vunpack.c.l.b16 %v180
        %v213 = vunpack.c.l.b16 %v181
        %v214 = vunpack.c.l.b16 %v182
        %v215 = vunpack.c.l.b16 %v183
        %v216 = vunpack.c.l.b16 %v184
        %v217 = vunpack.c.l.b16 %v185
        %v218 = vunpack.c.l.b16 %v186
        %v219 = vunpack.c.l.b16 %v187
        %v220 = vunpack.c.l.b16 %v188
        %v221 = vunpack.c.l.b16 %v189
        %v222 = vunpack.c.l.b16 %v190
        %v223 = vunpack.c.l.b16 %v191
        %v224 = vpack.c.b16 %v209, %v208
        %v225 = vpack.c.b16 %v211, %v210
        %v226 = vpack.c.b16 %v213, %v212
        %v227 = vpack.c.b16 %v215, %v214
        %v228 = vpack.c.b16 %v217, %v216
        %v229 = vpack.c.b16 %v219, %v218
        %v230 = vpack.c.b16 %v221, %v220
        %v231 = vpack.c.b16 %v223, %v222
        %240 = vmatpush.bf16.msra.mxu0 %v231
        %241 = vmatpush.bf16.msra.mxu0 %v230
        %242 = vmatpush.bf16.msra.mxu0 %v229
        %243 = vmatpush.bf16.msra.mxu0 %v228
        %244 = vmatpush.bf16.msra.mxu0 %v227
        %245 = vmatpush.bf16.msra.mxu0 %v226
        %246 = vmatpush.bf16.msra.mxu0 %v225
        %247 = vmatpush.bf16.msra.mxu0 %v224
        %248 = vmatmul.bf16.gmra.mxu0 %v175
        %v249 = vpop.f32.mrf.mxu0
        %v250 = vadd.f32 0.0, %v249
        %v251 = vpop.f32.mrf.mxu0
        %v252 = vadd.f32 0.0, %v251
        %253 = vdwg.mxu0
        %v254 = vmax.f32 %v250, 0.0
        %v255 = vmax.f32 %v252, 0.0
        %v256 = vpack.c.bf16 %v255, %v254
        %v257 = vld [vmem:[%s2] sm:$0xf]
        %v258 = vld [vmem:[%s2 + $0x4] sm:$0xf]
        %v259 = vld [vmem:[%s2 + $0x8] sm:$0xf]
        %v260 = vld [vmem:[%s2 + $0xc] sm:$0xf]
        %v261 = vld [vmem:[%s2 + $0x10] sm:$0xf]
        %v262 = vld [vmem:[%s2 + $0x14] sm:$0xf]
        %v263 = vld [vmem:[%s2 + $0x18] sm:$0xf]
        %v264 = vld [vmem:[%s2 + $0x1c] sm:$0xf]
        %v273 = vunpack.c.l.b16 %v257
        %v274 = vunpack.c.l.b16 %v258
        %v275 = vunpack.c.l.b16 %v259
        %v276 = vunpack.c.l.b16 %v260
        %v277 = vunpack.c.l.b16 %v261
        %v278 = vunpack.c.l.b16 %v262
        %v279 = vunpack.c.l.b16 %v263
        %v280 = vunpack.c.l.b16 %v264
        %v281 = vpack.c.b16 %v274, %v273
        %v282 = vpack.c.b16 %v276, %v275
        %v283 = vpack.c.b16 %v278, %v277
        %v284 = vpack.c.b16 %v280, %v279
        %vm289 = vcmask 523264
        %v291 = vsel %vm289, %v256, 0
        %293 = vmatpush.bf16.msra.mxu0 0
        %294 = vmatpush.bf16.msra.mxu0 0
        %295 = vmatpush.bf16.msra.mxu0 0
        %296 = vmatpush.bf16.msra.mxu0 0
        %297 = vmatpush.bf16.msra.mxu0 %v284
        %298 = vmatpush.bf16.msra.mxu0 %v283
        %299 = vmatpush.bf16.msra.mxu0 %v282
        %300 = vmatpush.bf16.msra.mxu0 %v281
        %301 = vmatmul.bf16.gmra.mxu0 %v291
        %v302 = vpop.f32.mrf.mxu0
        %v303 = vadd.f32 0.0, %v302
        %v304 = vpop.f32.mrf.mxu0
        %v305 = vadd.f32 0.0, %v304
        %306 = vdwg.mxu0
        %vm307 = vcmask 261120
        %308 = vst.msk [vmem:[%s164] sm:$0xff] %vm307, %v303
        %309 = vst.msk [vmem:[%s164 + $0x8] sm:$0xff] %vm307, %v305
        %s310 = sand.u32 %s93, 1
        %s311 = scalar_lea.sflag [#allocation3], %s310
        %s312 = sand.u32 %s93, 1
        %s313 = smul.addr %s312, 16
        %s314 = scalar_lea.vmem [#allocation2], %s313
        // Predicated region
        $region33: #{tpu_custom_call.1} parent=31 // pred_check
          %p315 = pneg %p103
        $region34: #{tpu_custom_call.1} parent=31 // pred_check_branch
          %317 = sbr.rel (%p315) target = $region36
        $region35: #{tpu_custom_call.1} parent=31 // pred_region
          %s318 = smul.u32 2, %s17
          %320 = vsyncadd %s311, 0
          %s321 = smul.addr %s318, 8
          %s322 = scalar_lea.hbm %s3, %s321
          %s323 = sshll.u32 %s314, 4
          %s324 = int_to_ptr.vmem [resolvable:$true] %s323
          %s325 = sshll.u32 %s322, 4
          %s326 = int_to_ptr.hbm [resolvable:$true] %s325
          %331 = dma.vmem_to_hbm [thread:$0]  %s324, 256, %s326, %s311, 128, 128, 8
        $region36: #{tpu_custom_call.1} parent=31 // pred_fallthru
          _
      $region32: #{tpu_custom_call.1} parent=5 // pred_fallthru
        _
      %p332 = scmp.le.s32.totalorder 2, %s12
      // Predicated region
      $region37: #{tpu_custom_call.1} parent=5 // pred_check
        %p333 = pneg %p332
      $region38: #{tpu_custom_call.1} parent=5 // pred_check_branch
        %335 = sbr.rel (%p333) target = $region40
      $region39: #{tpu_custom_call.1} parent=5 // pred_region
        %s336 = ssub.s32 %s12, 2
        // Predicated region
        $region41: #{tpu_custom_call.1} parent=39 // pred_check
          %p337 = pneg %p109
        $region42: #{tpu_custom_call.1} parent=39 // pred_check_branch
          %339 = sbr.rel (%p337) target = $region44
        $region43: #{tpu_custom_call.1} parent=39 // pred_region
          %s340 = sand.u32 %s94, 1
          %s341 = scalar_lea.sflag [#allocation3], %s340
          %s342 = sand.u32 %s94, 1
          %s343 = smul.addr %s342, 16
          %s344 = scalar_lea.vmem [#allocation2], %s343
          %346 = dma.done %s341, 256
        $region44: #{tpu_custom_call.1} parent=39 // pred_fallthru
          _
      $region40: #{tpu_custom_call.1} parent=5 // pred_fallthru
        _
    $region6: #{tpu_custom_call.1} parent=1 // loop_footer
      %s16 = sadd.s32 1, %s12
    $region7: #{tpu_custom_call.1} parent=1 // loop_footer_branch
      %11 = sbr.rel target = $region3
    $region8: #{tpu_custom_call.1} parent=1 // loop_exit
      _
    %347 = vsyncpa [#allocation3], 1
    %s348 = scalar_lea.sflag [#allocation3], 1
    %349 = vsyncpa %s348, 1

</llo_original>
